<compile_context>
chip_gen: v7x
topology: tpu7x:2x2x1
jax: 0.10.0
libtpu: 0.0.40
codegen_flags: <defaults>
</compile_context>

<pallas_src>
from functools import partial

import jax
import jax.numpy as jnp
from jax import lax
from jax.experimental import pallas as pl
from jax.experimental.pallas import tpu as pltpu


def _neck_kernel(x_ref, w_ref, b_ref, o_ref, acc_ref, *,
                 hw_total, hw_tile, lanes, chunks, inv_hw, mask_tail):
    # x_ref:   (n_tile, C, hw_tile)   spatial-flattened feature-map tile (native dtype)
    # w_ref:   (C, OUT)               Linear weight, transposed, native dtype (resident)
    # b_ref:   (1, OUT)               Linear bias (resident)
    # o_ref:   (n_tile, OUT)
    # acc_ref: (n_tile, C, lanes) f32 lane-wide running spatial sum
    k = pl.program_id(1)
    last = pl.num_programs(1) - 1

    @pl.when(k == 0)
    def _init():
        acc_ref[...] = jnp.zeros_like(acc_ref)

    def _accumulate(masked):
        valid = hw_total - k * hw_tile          # only meaningful on the tail tile

        def _add(ci):
            start = ci * lanes
            if not isinstance(start, int):
                start = pl.multiple_of(start, lanes)
            sl = x_ref[:, :, pl.ds(start, lanes)].astype(jnp.float32)
            if masked:
                lane = lax.broadcasted_iota(jnp.int32, sl.shape, dimension=2)
                sl = jnp.where(lane + start < valid, sl, 0.0)
            acc_ref[...] += sl                   # pure VPU add, no XLU

        if chunks <= 8:
            for ci in range(chunks):             # fully unrolled slab adds
                _add(ci)
        else:
            def _body(ci, carry):
                _add(ci)
                return carry
            lax.fori_loop(0, chunks, _body, 0)

    if mask_tail:
        @pl.when(k != last)
        def _steady():                            # steady state: pure load + add
            _accumulate(masked=False)

        @pl.when(k == last)
        def _tail():                              # only the tail tile pays the mask
            _accumulate(masked=True)
    else:
        _accumulate(masked=False)

    @pl.when(k == last)
    def _finish():
        # One cross-lane (XLU) reduce per batch tile, then the MXU matmul.
        pooled = jnp.sum(acc_ref[...], axis=-1) * inv_hw        # (n_tile, C) f32
        lhs = pooled if w_ref.dtype == jnp.float32 else pooled.astype(w_ref.dtype)
        y = jnp.dot(lhs, w_ref[...], preferred_element_type=jnp.float32)
        y = y + b_ref[...].astype(jnp.float32)
        o_ref[...] = y.astype(o_ref.dtype)


def _vmem_capacity_bytes():
    try:
        cap = int(getattr(pltpu.get_tpu_info(), "vmem_capacity_bytes", 0))
        if cap > 0:
            return cap
    except Exception:
        pass
    return 128 << 20                              # v5e / v6e default


def _choose_tiles(N, C, HW, itemsize, x_budget):
    # Batch tile: small (cheap lane-wide accumulator).  Must be a multiple of 8
    # or equal to N so the (n_tile, OUT) output block stays sublane-aligned.
    n_tile = N if N <= 8 else 8
    # TODO(synk): for v7x with N <= 8 the batch grid axis has a single entry so
    # the whole HBM-bound stream runs on one TensorCore; splitting the spatial
    # reduction across cores (per-core partial accumulators + combine) would
    # recover the second core.

    full_bytes = n_tile * C * HW * itemsize
    if full_bytes <= x_budget:
        hw_tile = HW                              # whole spatial extent, one tile
    else:
        slab = n_tile * C * 128 * itemsize        # one 128-lane slab
        hw_tile = max(128, (x_budget // max(1, slab)) * 128)
    return n_tile, hw_tile


def multi_linear_neck_forward(xs, w, b):
    """xs: list with one (N, C, H, W) array. w: (OUT, C), b: (OUT,). Returns [(N, OUT)].

    Equivalent to MultiLinearNeck(num_layers=1, with_avg_pool=True).forward(xs).
    """
    # TODO(synk): with_avg_pool=False (Linear over the flattened C*H*W vector) is
    # not implemented; the default config uses the pooled path below.
    assert len(xs) in (1, 2)
    x = xs[0]
    N, C, H, W = x.shape
    OUT, C_in = w.shape
    assert C_in == C
    HW = H * W

    x3 = x.reshape(N, C, HW)
    w_t = w.T                                     # (C, OUT), native dtype
    b2 = b.reshape(1, OUT)
    itemsize = jnp.dtype(x.dtype).itemsize

    # Generation-aware VMEM budgets.
    cap = _vmem_capacity_bytes()
    if cap <= (64 << 20):                         # v7x-class: 64 MiB per TensorCore
        x_budget, vmem_limit = 4 << 20, 48 << 20
    else:                                         # v5e / v6e: 128 MiB physical
        x_budget, vmem_limit = 12 << 20, 64 << 20

    n_tile, hw_tile = _choose_tiles(N, C, HW, itemsize, x_budget)
    grid = (pl.cdiv(N, n_tile), pl.cdiv(HW, hw_tile))
    mask_tail = (HW % hw_tile) != 0

    if hw_tile % 128 == 0:
        lanes, chunks = 128, hw_tile // 128
    else:                                         # small-HW single-tile case
        lanes, chunks = hw_tile, 1

    # Account for x buffers + resident weight + accumulator when sizing the limit.
    x_tile_bytes = n_tile * C * hw_tile * itemsize
    deep_pipeline = (cap <= (64 << 20) and grid[1] >= 8
                     and x_tile_bytes <= (2 << 20))
    x_bufs = 3 if deep_pipeline else 2
    acc_bytes = n_tile * max(C, 8) * max(lanes, 128) * 4
    wb_bytes = (C * OUT * jnp.dtype(w.dtype).itemsize
                + OUT * jnp.dtype(b.dtype).itemsize)
    out_bytes = n_tile * max(OUT, 128) * itemsize
    need = (x_bufs * x_tile_bytes + 2 * wb_bytes + acc_bytes
            + 2 * out_bytes + (2 << 20))
    vmem_limit = int(min(max(vmem_limit, need), cap - (16 << 20)))

    kernel = partial(_neck_kernel, hw_total=HW, hw_tile=hw_tile, lanes=lanes,
                     chunks=chunks, inv_hw=1.0 / float(HW), mask_tail=mask_tail)

    def _run(use_hints):
        def spec(shape, index_map, mode):
            if use_hints and mode is not None:
                return pl.BlockSpec(shape, index_map, pipeline_mode=mode)
            return pl.BlockSpec(shape, index_map)

        x_mode = pl.Buffered(3) if (use_hints and deep_pipeline) else None
        wb_mode = pl.Buffered(1) if use_hints else None   # constant index: 1 buffer

        return pl.pallas_call(
            kernel,
            out_shape=jax.ShapeDtypeStruct((N, OUT), x.dtype),
            grid_spec=pltpu.PrefetchScalarGridSpec(
                num_scalar_prefetch=0,
                grid=grid,
                in_specs=[
                    # Streamed feature-map tiles: batch tile i, spatial tile k.
                    spec((n_tile, C, hw_tile), lambda i, k: (i, 0, k), x_mode),
                    # Weight / bias stay resident (constant block index).
                    spec((C, OUT), lambda i, k: (0, 0), wb_mode),
                    spec((1, OUT), lambda i, k: (0, 0), wb_mode),
                ],
                out_specs=pl.BlockSpec((n_tile, OUT), lambda i, k: (i, 0)),
                scratch_shapes=[pltpu.VMEM((n_tile, C, lanes), jnp.float32)],
            ),
            compiler_params=pltpu.CompilerParams(
                dimension_semantics=("parallel", "arbitrary"),
                vmem_limit_bytes=vmem_limit,
            ),
        )(x3, w_t, b2)

    try:
        out = _run(use_hints=True)
    except Exception:
        # pipeline_mode / pl.Buffered not supported on this jax version — retry
        # with plain (default double-buffered) BlockSpecs.
        out = _run(use_hints=False)
    return [out]


def _reference(x_nchw, w, b):
    pooled = jnp.mean(x_nchw, axis=(2, 3))
    return pooled @ w.T + b


if __name__ == "__main__":
    # Small shapes consistent with the module: in_channels=4, out_channels=32
    N, C, H, W = 2, 4, 16, 16
    OUT = 32

    key = jax.random.PRNGKey(0)
    kx, kw, kb = jax.random.split(key, 3)

    x = jax.random.normal(kx, (N, C, H, W), dtype=jnp.float32)
    w = jax.random.normal(kw, (OUT, C), dtype=jnp.float32) * 0.1   # Linear weight (out, in)
    b = jax.random.normal(kb, (OUT,), dtype=jnp.float32) * 0.01    # Linear bias

    out = multi_linear_neck_forward([x], w, b)[0]
    out = jax.block_until_ready(out)

    ref = _reference(x, w, b)
    assert out.shape == (N, OUT)
    assert jnp.allclose(out, ref, atol=1e-4, rtol=1e-4), "mismatch vs pure-JAX reference"

    print("KERNEL_OK")
</pallas_src>

<mosaic_0001>
module attributes {stable_mosaic.version = 11 : i64} {
  func.func @_neck_kernel(%arg0: i32, %arg1: i32, %arg2: memref<2x4x256xf32, #tpu.memory_space<vmem>>, %arg3: memref<4x32xf32, #tpu.memory_space<vmem>>, %arg4: memref<1x32xf32, #tpu.memory_space<vmem>>, %arg5: memref<2x32xf32, #tpu.memory_space<vmem>>, %arg6: memref<2x4x128xf32, #tpu.memory_space<vmem>>) attributes {dimension_semantics = [#tpu.dimension_semantics<parallel>, #tpu.dimension_semantics<arbitrary>], iteration_bounds = array<i64: 1, 1>, scalar_prefetch = 0 : i64, scratch_operands = 1 : i64, tpu.core_type = #tpu.core_type<tc>, window_params = [{transform_indices = @transform_0, window_bounds = array<i64: 2, 4, 256>}, {pipeline_mode = #tpu.pipeline_mode<synchronous>, transform_indices = @transform_1, window_bounds = array<i64: 4, 32>}, {pipeline_mode = #tpu.pipeline_mode<synchronous>, transform_indices = @transform_2, window_bounds = array<i64: 1, 32>}, {transform_indices = @transform_3, window_bounds = array<i64: 2, 32>}]} {
    %c0_i32 = arith.constant 0 : i32
    %0 = arith.cmpi eq, %arg1, %c0_i32 : i32
    %1 = arith.extui %0 : i1 to i32
    %c0_i32_0 = arith.constant 0 : i32
    %2 = arith.cmpi ne, %1, %c0_i32_0 : i32
    scf.if %2 {
      %cst = arith.constant 0.000000e+00 : f32
      %14 = vector.broadcast %cst : f32 to vector<2x4x128xf32>
      %c0_19 = arith.constant 0 : index
      %c0_20 = arith.constant 0 : index
      %c0_21 = arith.constant 0 : index
      %15 = vector.load %arg6[%c0_19, %c0_20, %c0_21] : memref<2x4x128xf32, #tpu.memory_space<vmem>>, vector<2x4x128xf32>
      tpu.vector_store %arg6[%c0_19, %c0_20, %c0_21], %14 {strides = array<i32>} : memref<2x4x128xf32, #tpu.memory_space<vmem>>, vector<2x4x128xf32>,
    } else {
    }
    %c0 = arith.constant 0 : index
    %c0_1 = arith.constant 0 : index
    %c0_2 = arith.constant 0 : index
    %3 = vector.load %arg2[%c0, %c0_1, %c0_2] : memref<2x4x256xf32, #tpu.memory_space<vmem>>, vector<2x4x128xf32>
    %c0_3 = arith.constant 0 : index
    %c0_4 = arith.constant 0 : index
    %c0_5 = arith.constant 0 : index
    %4 = vector.load %arg6[%c0_3, %c0_4, %c0_5] : memref<2x4x128xf32, #tpu.memory_space<vmem>>, vector<2x4x128xf32>
    %5 = arith.addf %4, %3 : vector<2x4x128xf32>
    %c0_6 = arith.constant 0 : index
    %c0_7 = arith.constant 0 : index
    %c0_8 = arith.constant 0 : index
    %6 = vector.load %arg6[%c0_6, %c0_7, %c0_8] : memref<2x4x128xf32, #tpu.memory_space<vmem>>, vector<2x4x128xf32>
    tpu.vector_store %arg6[%c0_6, %c0_7, %c0_8], %5 {strides = array<i32>} : memref<2x4x128xf32, #tpu.memory_space<vmem>>, vector<2x4x128xf32>,
    %c0_9 = arith.constant 0 : index
    %c0_10 = arith.constant 0 : index
    %c128 = arith.constant 128 : index
    %7 = vector.load %arg2[%c0_9, %c0_10, %c128] : memref<2x4x256xf32, #tpu.memory_space<vmem>>, vector<2x4x128xf32>
    %c0_11 = arith.constant 0 : index
    %c0_12 = arith.constant 0 : index
    %c0_13 = arith.constant 0 : index
    %8 = vector.load %arg6[%c0_11, %c0_12, %c0_13] : memref<2x4x128xf32, #tpu.memory_space<vmem>>, vector<2x4x128xf32>
    %9 = arith.addf %8, %7 : vector<2x4x128xf32>
    %c0_14 = arith.constant 0 : index
    %c0_15 = arith.constant 0 : index
    %c0_16 = arith.constant 0 : index
    %10 = vector.load %arg6[%c0_14, %c0_15, %c0_16] : memref<2x4x128xf32, #tpu.memory_space<vmem>>, vector<2x4x128xf32>
    tpu.vector_store %arg6[%c0_14, %c0_15, %c0_16], %9 {strides = array<i32>} : memref<2x4x128xf32, #tpu.memory_space<vmem>>, vector<2x4x128xf32>,
    %c0_i32_17 = arith.constant 0 : i32
    %11 = arith.cmpi eq, %arg1, %c0_i32_17 : i32
    %12 = arith.extui %11 : i1 to i32
    %c0_i32_18 = arith.constant 0 : i32
    %13 = arith.cmpi ne, %12, %c0_i32_18 : i32
    scf.if %13 {
      %c0_19 = arith.constant 0 : index
      %c0_20 = arith.constant 0 : index
      %c0_21 = arith.constant 0 : index
      %14 = vector.load %arg6[%c0_19, %c0_20, %c0_21] : memref<2x4x128xf32, #tpu.memory_space<vmem>>, vector<2x4x128xf32>
      %cst = arith.constant dense<0.000000e+00> : vector<2x4xf32>
      %15 = vector.multi_reduction <add>, %14, %cst [2] : vector<2x4x128xf32> to vector<2x4xf32>
      %cst_22 = arith.constant 3.906250e-03 : f32
      %16 = vector.broadcast %cst_22 : f32 to vector<2x4xf32>
      %17 = arith.mulf %15, %16 : vector<2x4xf32>
      %c0_23 = arith.constant 0 : index
      %c0_24 = arith.constant 0 : index
      %18 = vector.load %arg3[%c0_23, %c0_24] : memref<4x32xf32, #tpu.memory_space<vmem>>, vector<4x32xf32>
      %cst_25 = arith.constant dense<0.000000e+00> : vector<2x32xf32>
      %19 = tpu.matmul %17, %18, %cst_25 {dimension_numbers = #tpu.dot_dimension_numbers<[1], [0], [0], [1], [0, 0, 1, 1], [], []>} : vector<2x4xf32>, vector<4x32xf32>, vector<2x32xf32> -> vector<2x32xf32>
      %c0_26 = arith.constant 0 : index
      %c0_27 = arith.constant 0 : index
      %20 = vector.load %arg4[%c0_26, %c0_27] : memref<1x32xf32, #tpu.memory_space<vmem>>, vector<1x32xf32>
      %21 = vector.broadcast %20 : vector<1x32xf32> to vector<2x32xf32>
      %22 = arith.addf %19, %21 : vector<2x32xf32>
      %c0_28 = arith.constant 0 : index
      %c0_29 = arith.constant 0 : index
      %23 = vector.load %arg5[%c0_28, %c0_29] : memref<2x32xf32, #tpu.memory_space<vmem>>, vector<2x32xf32>
      tpu.vector_store %arg5[%c0_28, %c0_29], %22 {strides = array<i32>} : memref<2x32xf32, #tpu.memory_space<vmem>>, vector<2x32xf32>,
    } else {
    }
    return
  }
  func.func @transform_0(%arg0: i32, %arg1: i32) -> (i32, i32, i32) {
    %c0_i32 = arith.constant 0 : i32
    %c0_i32_0 = arith.constant 0 : i32
    return %arg0, %c0_i32, %arg1 : i32, i32, i32
  }
  func.func @transform_1(%arg0: i32, %arg1: i32) -> (i32, i32) {
    %c0_i32 = arith.constant 0 : i32
    %c0_i32_0 = arith.constant 0 : i32
    %c0_i32_1 = arith.constant 0 : i32
    return %c0_i32, %c0_i32_0 : i32, i32
  }
  func.func @transform_2(%arg0: i32, %arg1: i32) -> (i32, i32) {
    %c0_i32 = arith.constant 0 : i32
    %c0_i32_0 = arith.constant 0 : i32
    %c0_i32_1 = arith.constant 0 : i32
    return %c0_i32, %c0_i32_0 : i32, i32
  }
  func.func @transform_3(%arg0: i32, %arg1: i32) -> (i32, i32) {
    %c0_i32 = arith.constant 0 : i32
    %c0_i32_0 = arith.constant 0 : i32
    return %arg0, %c0_i32 : i32, i32
  }
}

module attributes {stable_mosaic.version = 11 : i64} {
  func.func @_neck_kernel(%arg0: i32, %arg1: i32, %arg2: memref<2x4x256xf32, #tpu.memory_space<vmem>>, %arg3: memref<4x32xf32, #tpu.memory_space<vmem>>, %arg4: memref<1x32xf32, #tpu.memory_space<vmem>>, %arg5: memref<2x32xf32, #tpu.memory_space<vmem>>, %arg6: memref<2x4x128xf32, #tpu.memory_space<vmem>>) attributes {dimension_semantics = [#tpu.dimension_semantics<parallel>, #tpu.dimension_semantics<arbitrary>], iteration_bounds = array<i64: 1, 1>, scalar_prefetch = 0 : i64, scratch_operands = 1 : i64, tpu.core_type = #tpu.core_type<tc>, window_params = [{transform_indices = @transform_0, window_bounds = array<i64: 2, 4, 256>}, {pipeline_mode = #tpu.pipeline_mode<synchronous>, transform_indices = @transform_1, window_bounds = array<i64: 4, 32>}, {pipeline_mode = #tpu.pipeline_mode<synchronous>, transform_indices = @transform_2, window_bounds = array<i64: 1, 32>}, {transform_indices = @transform_3, window_bounds = array<i64: 2, 32>}]} {
    %c0_i32 = arith.constant 0 : i32
    %0 = arith.cmpi eq, %arg1, %c0_i32 : i32
    %1 = arith.extui %0 : i1 to i32
    %c0_i32_0 = arith.constant 0 : i32
    %2 = arith.cmpi ne, %1, %c0_i32_0 : i32
    scf.if %2 {
      %cst = arith.constant 0.000000e+00 : f32
      %14 = vector.broadcast %cst : f32 to vector<2x4x128xf32>
      %c0_19 = arith.constant 0 : index
      %c0_20 = arith.constant 0 : index
      %c0_21 = arith.constant 0 : index
      %15 = vector.load %arg6[%c0_19, %c0_20, %c0_21] : memref<2x4x128xf32, #tpu.memory_space<vmem>>, vector<2x4x128xf32>
      tpu.vector_store %arg6[%c0_19, %c0_20, %c0_21], %14 {strides = array<i32>} : memref<2x4x128xf32, #tpu.memory_space<vmem>>, vector<2x4x128xf32>,
    } else {
    }
    %c0 = arith.constant 0 : index
    %c0_1 = arith.constant 0 : index
    %c0_2 = arith.constant 0 : index
    %3 = vector.load %arg2[%c0, %c0_1, %c0_2] : memref<2x4x256xf32, #tpu.memory_space<vmem>>, vector<2x4x128xf32>
    %c0_3 = arith.constant 0 : index
    %c0_4 = arith.constant 0 : index
    %c0_5 = arith.constant 0 : index
    %4 = vector.load %arg6[%c0_3, %c0_4, %c0_5] : memref<2x4x128xf32, #tpu.memory_space<vmem>>, vector<2x4x128xf32>
    %5 = arith.addf %4, %3 : vector<2x4x128xf32>
    %c0_6 = arith.constant 0 : index
    %c0_7 = arith.constant 0 : index
    %c0_8 = arith.constant 0 : index
    %6 = vector.load %arg6[%c0_6, %c0_7, %c0_8] : memref<2x4x128xf32, #tpu.memory_space<vmem>>, vector<2x4x128xf32>
    tpu.vector_store %arg6[%c0_6, %c0_7, %c0_8], %5 {strides = array<i32>} : memref<2x4x128xf32, #tpu.memory_space<vmem>>, vector<2x4x128xf32>,
    %c0_9 = arith.constant 0 : index
    %c0_10 = arith.constant 0 : index
    %c128 = arith.constant 128 : index
    %7 = vector.load %arg2[%c0_9, %c0_10, %c128] : memref<2x4x256xf32, #tpu.memory_space<vmem>>, vector<2x4x128xf32>
    %c0_11 = arith.constant 0 : index
    %c0_12 = arith.constant 0 : index
    %c0_13 = arith.constant 0 : index
    %8 = vector.load %arg6[%c0_11, %c0_12, %c0_13] : memref<2x4x128xf32, #tpu.memory_space<vmem>>, vector<2x4x128xf32>
    %9 = arith.addf %8, %7 : vector<2x4x128xf32>
    %c0_14 = arith.constant 0 : index
    %c0_15 = arith.constant 0 : index
    %c0_16 = arith.constant 0 : index
    %10 = vector.load %arg6[%c0_14, %c0_15, %c0_16] : memref<2x4x128xf32, #tpu.memory_space<vmem>>, vector<2x4x128xf32>
    tpu.vector_store %arg6[%c0_14, %c0_15, %c0_16], %9 {strides = array<i32>} : memref<2x4x128xf32, #tpu.memory_space<vmem>>, vector<2x4x128xf32>,
    %c0_i32_17 = arith.constant 0 : i32
    %11 = arith.cmpi eq, %arg1, %c0_i32_17 : i32
    %12 = arith.extui %11 : i1 to i32
    %c0_i32_18 = arith.constant 0 : i32
    %13 = arith.cmpi ne, %12, %c0_i32_18 : i32
    scf.if %13 {
      %c0_19 = arith.constant 0 : index
      %c0_20 = arith.constant 0 : index
      %c0_21 = arith.constant 0 : index
      %14 = vector.load %arg6[%c0_19, %c0_20, %c0_21] : memref<2x4x128xf32, #tpu.memory_space<vmem>>, vector<2x4x128xf32>
      %cst = arith.constant dense<0.000000e+00> : vector<2x4xf32>
      %15 = vector.multi_reduction <add>, %14, %cst [2] : vector<2x4x128xf32> to vector<2x4xf32>
      %cst_22 = arith.constant 3.906250e-03 : f32
      %16 = vector.broadcast %cst_22 : f32 to vector<2x4xf32>
      %17 = arith.mulf %15, %16 : vector<2x4xf32>
      %c0_23 = arith.constant 0 : index
      %c0_24 = arith.constant 0 : index
      %18 = vector.load %arg3[%c0_23, %c0_24] : memref<4x32xf32, #tpu.memory_space<vmem>>, vector<4x32xf32>
      %cst_25 = arith.constant dense<0.000000e+00> : vector<2x32xf32>
      %19 = tpu.matmul %17, %18, %cst_25 {dimension_numbers = #tpu.dot_dimension_numbers<[1], [0], [0], [1], [0, 0, 1, 1], [], []>} : vector<2x4xf32>, vector<4x32xf32>, vector<2x32xf32> -> vector<2x32xf32>
      %c0_26 = arith.constant 0 : index
      %c0_27 = arith.constant 0 : index
      %20 = vector.load %arg4[%c0_26, %c0_27] : memref<1x32xf32, #tpu.memory_space<vmem>>, vector<1x32xf32>
      %21 = vector.broadcast %20 : vector<1x32xf32> to vector<2x32xf32>
      %22 = arith.addf %19, %21 : vector<2x32xf32>
      %c0_28 = arith.constant 0 : index
      %c0_29 = arith.constant 0 : index
      %23 = vector.load %arg5[%c0_28, %c0_29] : memref<2x32xf32, #tpu.memory_space<vmem>>, vector<2x32xf32>
      tpu.vector_store %arg5[%c0_28, %c0_29], %22 {strides = array<i32>} : memref<2x32xf32, #tpu.memory_space<vmem>>, vector<2x32xf32>,
    } else {
    }
    return
  }
  func.func @transform_0(%arg0: i32, %arg1: i32) -> (i32, i32, i32) {
    %c0_i32 = arith.constant 0 : i32
    %c0_i32_0 = arith.constant 0 : i32
    return %arg0, %c0_i32, %arg1 : i32, i32, i32
  }
  func.func @transform_1(%arg0: i32, %arg1: i32) -> (i32, i32) {
    %c0_i32 = arith.constant 0 : i32
    %c0_i32_0 = arith.constant 0 : i32
    %c0_i32_1 = arith.constant 0 : i32
    return %c0_i32, %c0_i32_0 : i32, i32
  }
  func.func @transform_2(%arg0: i32, %arg1: i32) -> (i32, i32) {
    %c0_i32 = arith.constant 0 : i32
    %c0_i32_0 = arith.constant 0 : i32
    %c0_i32_1 = arith.constant 0 : i32
    return %c0_i32, %c0_i32_0 : i32, i32
  }
  func.func @transform_3(%arg0: i32, %arg1: i32) -> (i32, i32) {
    %c0_i32 = arith.constant 0 : i32
    %c0_i32_0 = arith.constant 0 : i32
    return %arg0, %c0_i32 : i32, i32
  }
}

</mosaic_0001>

<llo_original>
// kernel: tpu_custom_call.1
$region0: #{tpu_custom_call.1}
  #allocation0 [shape = 'u32[]', space=smem, size = 0x4, offset = 0x4, fixed_abs, tag = 'smem constant byte address 0x4 - core index']
  #allocation1 [shape = 'u32[144,128]{1,0:T(1,128)}', space=vmem, size = 0x12000, scoped, tag = 'internal scratch']
  #allocation2 [shape = 'f32[2,4,128]{2,1,0:T(4,128)}', space=vmem, size = 0x1000, scoped, tag = 'scratch operand']
  %s0 = inlined_call_operand.hbm [shape: f32[2,4,256], index: 0, kind: input, shape index: {}]
  %s1 = inlined_call_operand.hbm [shape: f32[4,32], index: 1, kind: input, shape index: {}]
  %s2 = inlined_call_operand.hbm [shape: f32[1,32], index: 2, kind: input, shape index: {}]
  %s3 = inlined_call_operand.hbm [shape: f32[2,32], index: 3, kind: output, shape index: {}]
  %s4 = sld [smem:[#allocation0]]
  $region42: #{tpu_custom_call.1} parent=0
    _
  %s6 = ssub.s32 1, %s4
  %s7 = scalar_select 0, %s6, %s4
  $region1: #{tpu_custom_call.1} parent=0
    #allocation3 [shape = 'u8[8192]{0}', space=vmem, size = 0x2000, scoped, tag = 'input window, operand 0, single buffered']
    #allocation4 [shape = 's32[1]{0}', space=sflag, size = 0x4, scoped, tag = 'scoped memory for tpu_custom_call.1']
    #allocation5 [shape = 's32[1]{0}', space=sflag, size = 0x4, scoped, tag = 'scoped memory for tpu_custom_call.1']
    #allocation6 [shape = 'u8[2048]{0}', space=vmem, size = 0x800, scoped, tag = 'input window, operand 1, single buffered']
    #allocation7 [shape = 's32[1]{0}', space=sflag, size = 0x4, scoped, tag = 'scoped memory for tpu_custom_call.1']
    #allocation8 [shape = 'u8[512]{0}', space=vmem, size = 0x400, scoped, tag = 'input window, operand 2, single buffered']
    #allocation9 [shape = 'u8[1024]{0}', space=vmem, size = 0x400, scoped, tag = 'output window, operand 0, single buffered']
    %8 = vsyncpa [#allocation4], 0
    %9 = vsyncpa [#allocation7], 0
    %10 = vsyncpa [#allocation5], 0
    // Predicated region
    $region2: #{tpu_custom_call.1} parent=1 // pred_check
      _
    $region3: #{tpu_custom_call.1} parent=1 // pred_check_branch
      %12 = sbr.rel (0) target = $region5
    $region4: #{tpu_custom_call.1} parent=1 // pred_region
      %s14 = ssub.s32 256, 256
      %15 = vsyncadd [#allocation4], %s14
      %s16 = sshll.u32 [#allocation3], 4
      %s17 = int_to_ptr.vmem [resolvable:$true] %s16
      %22 = dma.hbm_to_vmem [thread:$0]  %s0, 256, %s17, [#allocation4], 128, 128, 8
    $region5: #{tpu_custom_call.1} parent=1 // pred_fallthru
      _
    // Predicated region
    $region6: #{tpu_custom_call.1} parent=1 // pred_check
      _
    $region7: #{tpu_custom_call.1} parent=1 // pred_check_branch
      %24 = sbr.rel (0) target = $region9
    $region8: #{tpu_custom_call.1} parent=1 // pred_region
      %s26 = ssub.s32 64, 64
      %27 = vsyncadd [#allocation7], %s26
      %s29 = sshll.u32 [#allocation6], 4
      %s30 = int_to_ptr.vmem [resolvable:$true] %s29
      %32 = dma.hbm_to_vmem [thread:$0]  %s1, 64, %s30, [#allocation7]
    $region9: #{tpu_custom_call.1} parent=1 // pred_fallthru
      _
    // Predicated region
    $region10: #{tpu_custom_call.1} parent=1 // pred_check
      _
    $region11: #{tpu_custom_call.1} parent=1 // pred_check_branch
      %34 = sbr.rel (0) target = $region13
    $region12: #{tpu_custom_call.1} parent=1 // pred_region
      %s36 = ssub.s32 16, 16
      %37 = vsyncadd [#allocation7], %s36
      %s39 = sshll.u32 [#allocation8], 4
      %s40 = int_to_ptr.vmem [resolvable:$true] %s39
      %42 = dma.hbm_to_vmem [thread:$0]  %s2, 16, %s40, [#allocation7]
    $region13: #{tpu_custom_call.1} parent=1 // pred_fallthru
      _
    // Predicated region
    $region14: #{tpu_custom_call.1} parent=1 // pred_check
      _
    $region15: #{tpu_custom_call.1} parent=1 // pred_check_branch
      %44 = sbr.rel (0) target = $region17
    $region16: #{tpu_custom_call.1} parent=1 // pred_region
      %45 = dma.done [#allocation4], 256
    $region17: #{tpu_custom_call.1} parent=1 // pred_fallthru
      _
    // Predicated region
    $region18: #{tpu_custom_call.1} parent=1 // pred_check
      _
    $region19: #{tpu_custom_call.1} parent=1 // pred_check_branch
      %47 = sbr.rel (0) target = $region21
    $region20: #{tpu_custom_call.1} parent=1 // pred_region
      %48 = dma.done [#allocation7], 64
    $region21: #{tpu_custom_call.1} parent=1 // pred_fallthru
      _
    // Predicated region
    $region22: #{tpu_custom_call.1} parent=1 // pred_check
      _
    $region23: #{tpu_custom_call.1} parent=1 // pred_check_branch
      %50 = sbr.rel (0) target = $region25
    $region24: #{tpu_custom_call.1} parent=1 // pred_region
      %51 = dma.done [#allocation7], 16
    $region25: #{tpu_custom_call.1} parent=1 // pred_fallthru
      _
    %p52 = scmp.eq.s32.totalorder 0, 0
    // Predicated region
    $region26: #{tpu_custom_call.1} parent=1 // pred_check
      %p53 = pneg %p52
    $region27: #{tpu_custom_call.1} parent=1 // pred_check_branch
      %55 = sbr.rel (%p53) target = $region29
    $region28: #{tpu_custom_call.1} parent=1 // pred_region
      %56 = vst [vmem:[#allocation2] sm:$0xf] 0.0
      %57 = vst [vmem:[#allocation2 + $0x4] sm:$0xf] 0.0
    $region29: #{tpu_custom_call.1} parent=1 // pred_fallthru
      _
    %v58 = vld [vmem:[#allocation3] sm:$0xf]
    %v59 = vld [vmem:[#allocation3 + $0x8] sm:$0xf]
    %v60 = vld [vmem:[#allocation2] sm:$0xf]
    %v61 = vld [vmem:[#allocation2 + $0x4] sm:$0xf]
    %v62 = vadd.f32 %v60, %v58
    %v63 = vadd.f32 %v61, %v59
    %64 = vst [vmem:[#allocation2] sm:$0xf] %v62
    %65 = vst [vmem:[#allocation2 + $0x4] sm:$0xf] %v63
    %v66 = vld [vmem:[#allocation3 + $0x4] sm:$0xf]
    %v67 = vld [vmem:[#allocation3 + $0xc] sm:$0xf]
    %v68 = vld [vmem:[#allocation2] sm:$0xf]
    %v69 = vld [vmem:[#allocation2 + $0x4] sm:$0xf]
    %v70 = vadd.f32 %v68, %v66
    %v71 = vadd.f32 %v69, %v67
    %72 = vst [vmem:[#allocation2] sm:$0xf] %v70
    %73 = vst [vmem:[#allocation2 + $0x4] sm:$0xf] %v71
    // Predicated region
    $region30: #{tpu_custom_call.1} parent=1 // pred_check
      %p74 = pneg %p52
    $region31: #{tpu_custom_call.1} parent=1 // pred_check_branch
      %76 = sbr.rel (%p74) target = $region33
    $region32: #{tpu_custom_call.1} parent=1 // pred_region
      %v77 = vld [vmem:[#allocation2] sm:$0xf]
      %v78 = vld [vmem:[#allocation2 + $0x4] sm:$0xf]
      %vm79 = vcmask 1043456
      %v80 = vsel %vm79, %v77, 0.0
      %81 = vadd.xlane.f32.xlu0 %v80
      %v82 = vpop.xlane.xlu0 %81
      %v83 = vsel %vm79, %v78, 0.0
      %84 = vadd.xlane.f32.xlu0 %v83
      %v85 = vpop.xlane.xlu0 %84
      %v86 = vmul.f32 %v82, 0.00390625
      %v87 = vmul.f32 %v85, 0.00390625
      %v88 = vld [vmem:[#allocation6] sm:$0xf]
      %v89 = vld [vmem:[#allocation8] sm:$0x1]
      %v91 = vlaneseq
      %v92 = vshrl.u32 %v91, 7
      %v93 = vsub.s32 0, %v92
      %v94 = vrot.slane %v89, %v93
      %v98 = vlaneseq
      %v99 = vand.u32 %v98, 127
      %v100 = vlaneseq
      %v101 = vshrl.u32 %v100, 7
      %v102 = vsub.s32 %v99, %v101
      %v103 = vrot.slane %v86, %v102
      %v104 = vlaneseq
      %v105 = vshrl.u32 %v104, 7
      %v106 = vsub.s32 %v99, %v105
      %v107 = vrot.slane %v87, %v106
      %vm108 = vcmask 1041409
      %v109 = vsel %vm108, %v107, %v103
      %vm110 = vcmask 31744
      %v111 = vsel %vm110, %v109, 0
      %v114 = vsel %vm79, %v88, 0
      %116 = vmatprep.subr.mxu0 0.0
      %117 = vmatpush1.msra.mxu0 %v114
      %118 = vmatprep.subr.mxu0 0.0
      %119 = vmatpush1.msra.mxu0 0.0
      %120 = vmatprep.subr.mxu0 0.0
      %121 = vmatpush1.msra.mxu0 0.0
      %122 = vmatprep.subr.mxu0 0.0
      %123 = vmatpush1.msra.mxu0 0.0
      %124 = vmatprep.subr.mxu0 0.0
      %125 = vmatpush1.msra.mxu0 0.0
      %126 = vmatprep.subr.mxu0 0.0
      %127 = vmatpush1.msra.mxu0 0.0
      %128 = vmatprep.subr.mxu0 0.0
      %129 = vmatpush1.msra.mxu0 0.0
      %130 = vmatprep.subr.mxu0 0.0
      %131 = vmatpush1.msra.mxu0 0.0
      %132 = vmatprep.subr.mxu0 0.0
      %133 = vmatpush1.msra.mxu0 0.0
      %134 = vmatprep.subr.mxu0 0.0
      %135 = vmatpush1.msra.mxu0 0.0
      %136 = vmatprep.subr.mxu0 0.0
      %137 = vmatpush1.msra.mxu0 0.0
      %138 = vmatprep.subr.mxu0 0.0
      %139 = vmatpush1.msra.mxu0 0.0
      %140 = vmatprep.subr.mxu0 0.0
      %141 = vmatpush1.msra.mxu0 0.0
      %142 = vmatprep.subr.mxu0 0.0
      %143 = vmatpush1.msra.mxu0 0.0
      %144 = vmatprep.subr.mxu0 0.0
      %145 = vmatpush1.msra.mxu0 0.0
      %146 = vmatprep.subr.mxu0 0.0
      %147 = vmatpush1.msra.mxu0 0.0
      %148 = vmatprep.subr.mxu0 0.0
      %149 = vmatpush1.msra.mxu0 0.0
      %150 = vmatprep.subr.mxu0 0.0
      %151 = vmatpush1.msra.mxu0 0.0
      %152 = vmatprep.subr.mxu0 0.0
      %153 = vmatpush1.msra.mxu0 0.0
      %154 = vmatprep.subr.mxu0 0.0
      %155 = vmatpush1.msra.mxu0 0.0
      %156 = vmatprep.subr.mxu0 0.0
      %157 = vmatpush1.msra.mxu0 0.0
      %158 = vmatprep.subr.mxu0 0.0
      %159 = vmatpush1.msra.mxu0 0.0
      %160 = vmatprep.subr.mxu0 0.0
      %161 = vmatpush1.msra.mxu0 0.0
      %162 = vmatprep.subr.mxu0 0.0
      %163 = vmatpush1.msra.mxu0 0.0
      %164 = vmatprep.subr.mxu0 0.0
      %165 = vmatpush1.msra.mxu0 0.0
      %166 = vmatprep.subr.mxu0 0.0
      %167 = vmatpush1.msra.mxu0 0.0
      %168 = vmatprep.subr.mxu0 0.0
      %169 = vmatpush1.msra.mxu0 0.0
      %170 = vmatprep.subr.mxu0 0.0
      %171 = vmatpush1.msra.mxu0 0.0
      %172 = vmatprep.subr.mxu0 0.0
      %173 = vmatpush1.msra.mxu0 0.0
      %174 = vmatprep.subr.mxu0 0.0
      %175 = vmatpush1.msra.mxu0 0.0
      %176 = vmatprep.subr.mxu0 0.0
      %177 = vmatpush1.msra.mxu0 0.0
      %178 = vmatprep.subr.mxu0 0.0
      %179 = vmatpush1.msra.mxu0 0.0
      %180 = vmatprep.mubr.f32.mxu0 0.0
      %181 = vmatmul.mubr.f32.gmra.mrb[0].mxu0 %v111
      %v182 = vpop.f32.mrb[0].mxu0
      %v183 = vadd.f32 %v94, %v182
      %v184 = vpop.f32.mrb[0].mxu0
      %185 = vdwg.mxu0
      %vm186 = vcmask 254976
      %187 = vst.msk [vmem:[#allocation9] sm:$0x3] %vm186, %v183
    $region33: #{tpu_custom_call.1} parent=1 // pred_fallthru
      _
    // Predicated region
    $region34: #{tpu_custom_call.1} parent=1 // pred_check
      _
    $region35: #{tpu_custom_call.1} parent=1 // pred_check_branch
      %189 = sbr.rel (0) target = $region37
    $region36: #{tpu_custom_call.1} parent=1 // pred_region
      %s191 = ssub.s32 32, 32
      %192 = vsyncadd [#allocation5], %s191
      %s194 = sshll.u32 [#allocation9], 4
      %s195 = int_to_ptr.vmem [resolvable:$true] %s194
      %197 = dma.vmem_to_hbm [thread:$0]  %s195, 32, %s3, [#allocation5]
    $region37: #{tpu_custom_call.1} parent=1 // pred_fallthru
      _
    // Predicated region
    $region38: #{tpu_custom_call.1} parent=1 // pred_check
      _
    $region39: #{tpu_custom_call.1} parent=1 // pred_check_branch
      %199 = sbr.rel (0) target = $region41
    $region40: #{tpu_custom_call.1} parent=1 // pred_region
      %200 = dma.done [#allocation5], 32
    $region41: #{tpu_custom_call.1} parent=1 // pred_fallthru
      _
    %201 = vsyncpa [#allocation4], 1
    %202 = vsyncpa [#allocation7], 1
    %203 = vsyncpa [#allocation5], 1

// kernel: tpu_custom_call.1
$region0: #{tpu_custom_call.1}
  #allocation0 [shape = 'u32[]', space=smem, size = 0x4, offset = 0x4, fixed_abs, tag = 'smem constant byte address 0x4 - core index']
  #allocation1 [shape = 'u32[144,128]{1,0:T(1,128)}', space=vmem, size = 0x12000, scoped, tag = 'internal scratch']
  #allocation2 [shape = 'f32[2,4,128]{2,1,0:T(4,128)}', space=vmem, size = 0x1000, scoped, tag = 'scratch operand']
  %s0 = inlined_call_operand.hbm [shape: f32[2,4,256], index: 0, kind: input, shape index: {}]
  %s1 = inlined_call_operand.hbm [shape: f32[4,32], index: 1, kind: input, shape index: {}]
  %s2 = inlined_call_operand.hbm [shape: f32[1,32], index: 2, kind: input, shape index: {}]
  %s3 = inlined_call_operand.hbm [shape: f32[2,32], index: 3, kind: output, shape index: {}]
  %s4 = sld [smem:[#allocation0]]
  $region42: #{tpu_custom_call.1} parent=0
    _
  %s6 = ssub.s32 1, %s4
  %s7 = scalar_select 0, %s6, %s4
  $region1: #{tpu_custom_call.1} parent=0
    #allocation3 [shape = 'u8[8192]{0}', space=vmem, size = 0x2000, scoped, tag = 'input window, operand 0, single buffered']
    #allocation4 [shape = 's32[1]{0}', space=sflag, size = 0x4, scoped, tag = 'scoped memory for tpu_custom_call.1']
    #allocation5 [shape = 's32[1]{0}', space=sflag, size = 0x4, scoped, tag = 'scoped memory for tpu_custom_call.1']
    #allocation6 [shape = 'u8[2048]{0}', space=vmem, size = 0x800, scoped, tag = 'input window, operand 1, single buffered']
    #allocation7 [shape = 's32[1]{0}', space=sflag, size = 0x4, scoped, tag = 'scoped memory for tpu_custom_call.1']
    #allocation8 [shape = 'u8[512]{0}', space=vmem, size = 0x400, scoped, tag = 'input window, operand 2, single buffered']
    #allocation9 [shape = 'u8[1024]{0}', space=vmem, size = 0x400, scoped, tag = 'output window, operand 0, single buffered']
    %8 = vsyncpa [#allocation4], 0
    %9 = vsyncpa [#allocation7], 0
    %10 = vsyncpa [#allocation5], 0
    // Predicated region
    $region2: #{tpu_custom_call.1} parent=1 // pred_check
      _
    $region3: #{tpu_custom_call.1} parent=1 // pred_check_branch
      %12 = sbr.rel (0) target = $region5
    $region4: #{tpu_custom_call.1} parent=1 // pred_region
      %s14 = ssub.s32 256, 256
      %15 = vsyncadd [#allocation4], %s14
      %s16 = sshll.u32 [#allocation3], 4
      %s17 = int_to_ptr.vmem [resolvable:$true] %s16
      %22 = dma.hbm_to_vmem [thread:$0]  %s0, 256, %s17, [#allocation4], 128, 128, 8
    $region5: #{tpu_custom_call.1} parent=1 // pred_fallthru
      _
    // Predicated region
    $region6: #{tpu_custom_call.1} parent=1 // pred_check
      _
    $region7: #{tpu_custom_call.1} parent=1 // pred_check_branch
      %24 = sbr.rel (0) target = $region9
    $region8: #{tpu_custom_call.1} parent=1 // pred_region
      %s26 = ssub.s32 64, 64
      %27 = vsyncadd [#allocation7], %s26
      %s29 = sshll.u32 [#allocation6], 4
      %s30 = int_to_ptr.vmem [resolvable:$true] %s29
      %32 = dma.hbm_to_vmem [thread:$0]  %s1, 64, %s30, [#allocation7]
    $region9: #{tpu_custom_call.1} parent=1 // pred_fallthru
      _
    // Predicated region
    $region10: #{tpu_custom_call.1} parent=1 // pred_check
      _
    $region11: #{tpu_custom_call.1} parent=1 // pred_check_branch
      %34 = sbr.rel (0) target = $region13
    $region12: #{tpu_custom_call.1} parent=1 // pred_region
      %s36 = ssub.s32 16, 16
      %37 = vsyncadd [#allocation7], %s36
      %s39 = sshll.u32 [#allocation8], 4
      %s40 = int_to_ptr.vmem [resolvable:$true] %s39
      %42 = dma.hbm_to_vmem [thread:$0]  %s2, 16, %s40, [#allocation7]
    $region13: #{tpu_custom_call.1} parent=1 // pred_fallthru
      _
    // Predicated region
    $region14: #{tpu_custom_call.1} parent=1 // pred_check
      _
    $region15: #{tpu_custom_call.1} parent=1 // pred_check_branch
      %44 = sbr.rel (0) target = $region17
    $region16: #{tpu_custom_call.1} parent=1 // pred_region
      %45 = dma.done [#allocation4], 256
    $region17: #{tpu_custom_call.1} parent=1 // pred_fallthru
      _
    // Predicated region
    $region18: #{tpu_custom_call.1} parent=1 // pred_check
      _
    $region19: #{tpu_custom_call.1} parent=1 // pred_check_branch
      %47 = sbr.rel (0) target = $region21
    $region20: #{tpu_custom_call.1} parent=1 // pred_region
      %48 = dma.done [#allocation7], 64
    $region21: #{tpu_custom_call.1} parent=1 // pred_fallthru
      _
    // Predicated region
    $region22: #{tpu_custom_call.1} parent=1 // pred_check
      _
    $region23: #{tpu_custom_call.1} parent=1 // pred_check_branch
      %50 = sbr.rel (0) target = $region25
    $region24: #{tpu_custom_call.1} parent=1 // pred_region
      %51 = dma.done [#allocation7], 16
    $region25: #{tpu_custom_call.1} parent=1 // pred_fallthru
      _
    %p52 = scmp.eq.s32.totalorder 0, 0
    // Predicated region
    $region26: #{tpu_custom_call.1} parent=1 // pred_check
      %p53 = pneg %p52
    $region27: #{tpu_custom_call.1} parent=1 // pred_check_branch
      %55 = sbr.rel (%p53) target = $region29
    $region28: #{tpu_custom_call.1} parent=1 // pred_region
      %56 = vst [vmem:[#allocation2] sm:$0xf] 0.0
      %57 = vst [vmem:[#allocation2 + $0x4] sm:$0xf] 0.0
    $region29: #{tpu_custom_call.1} parent=1 // pred_fallthru
      _
    %v58 = vld [vmem:[#allocation3] sm:$0xf]
    %v59 = vld [vmem:[#allocation3 + $0x8] sm:$0xf]
    %v60 = vld [vmem:[#allocation2] sm:$0xf]
    %v61 = vld [vmem:[#allocation2 + $0x4] sm:$0xf]
    %v62 = vadd.f32 %v60, %v58
    %v63 = vadd.f32 %v61, %v59
    %64 = vst [vmem:[#allocation2] sm:$0xf] %v62
    %65 = vst [vmem:[#allocation2 + $0x4] sm:$0xf] %v63
    %v66 = vld [vmem:[#allocation3 + $0x4] sm:$0xf]
    %v67 = vld [vmem:[#allocation3 + $0xc] sm:$0xf]
    %v68 = vld [vmem:[#allocation2] sm:$0xf]
    %v69 = vld [vmem:[#allocation2 + $0x4] sm:$0xf]
    %v70 = vadd.f32 %v68, %v66
    %v71 = vadd.f32 %v69, %v67
    %72 = vst [vmem:[#allocation2] sm:$0xf] %v70
    %73 = vst [vmem:[#allocation2 + $0x4] sm:$0xf] %v71
    // Predicated region
    $region30: #{tpu_custom_call.1} parent=1 // pred_check
      %p74 = pneg %p52
    $region31: #{tpu_custom_call.1} parent=1 // pred_check_branch
      %76 = sbr.rel (%p74) target = $region33
    $region32: #{tpu_custom_call.1} parent=1 // pred_region
      %v77 = vld [vmem:[#allocation2] sm:$0xf]
      %v78 = vld [vmem:[#allocation2 + $0x4] sm:$0xf]
      %vm79 = vcmask 1043456
      %v80 = vsel %vm79, %v77, 0.0
      %81 = vadd.xlane.f32.xlu0 %v80
      %v82 = vpop.xlane.xlu0 %81
      %v83 = vsel %vm79, %v78, 0.0
      %84 = vadd.xlane.f32.xlu0 %v83
      %v85 = vpop.xlane.xlu0 %84
      %v86 = vmul.f32 %v82, 0.00390625
      %v87 = vmul.f32 %v85, 0.00390625
      %v88 = vld [vmem:[#allocation6] sm:$0xf]
      %v89 = vld [vmem:[#allocation8] sm:$0x1]
      %v91 = vlaneseq
      %v92 = vshrl.u32 %v91, 7
      %v93 = vsub.s32 0, %v92
      %v94 = vrot.slane %v89, %v93
      %v98 = vlaneseq
      %v99 = vand.u32 %v98, 127
      %v100 = vlaneseq
      %v101 = vshrl.u32 %v100, 7
      %v102 = vsub.s32 %v99, %v101
      %v103 = vrot.slane %v86, %v102
      %v104 = vlaneseq
      %v105 = vshrl.u32 %v104, 7
      %v106 = vsub.s32 %v99, %v105
      %v107 = vrot.slane %v87, %v106
      %vm108 = vcmask 1041409
      %v109 = vsel %vm108, %v107, %v103
      %vm110 = vcmask 31744
      %v111 = vsel %vm110, %v109, 0
      %v114 = vsel %vm79, %v88, 0
      %116 = vmatprep.subr.mxu0 0.0
      %117 = vmatpush1.msra.mxu0 %v114
      %118 = vmatprep.subr.mxu0 0.0
      %119 = vmatpush1.msra.mxu0 0.0
      %120 = vmatprep.subr.mxu0 0.0
      %121 = vmatpush1.msra.mxu0 0.0
      %122 = vmatprep.subr.mxu0 0.0
      %123 = vmatpush1.msra.mxu0 0.0
      %124 = vmatprep.subr.mxu0 0.0
      %125 = vmatpush1.msra.mxu0 0.0
      %126 = vmatprep.subr.mxu0 0.0
      %127 = vmatpush1.msra.mxu0 0.0
      %128 = vmatprep.subr.mxu0 0.0
      %129 = vmatpush1.msra.mxu0 0.0
      %130 = vmatprep.subr.mxu0 0.0
      %131 = vmatpush1.msra.mxu0 0.0
      %132 = vmatprep.subr.mxu0 0.0
      %133 = vmatpush1.msra.mxu0 0.0
      %134 = vmatprep.subr.mxu0 0.0
      %135 = vmatpush1.msra.mxu0 0.0
      %136 = vmatprep.subr.mxu0 0.0
      %137 = vmatpush1.msra.mxu0 0.0
      %138 = vmatprep.subr.mxu0 0.0
      %139 = vmatpush1.msra.mxu0 0.0
      %140 = vmatprep.subr.mxu0 0.0
      %141 = vmatpush1.msra.mxu0 0.0
      %142 = vmatprep.subr.mxu0 0.0
      %143 = vmatpush1.msra.mxu0 0.0
      %144 = vmatprep.subr.mxu0 0.0
      %145 = vmatpush1.msra.mxu0 0.0
      %146 = vmatprep.subr.mxu0 0.0
      %147 = vmatpush1.msra.mxu0 0.0
      %148 = vmatprep.subr.mxu0 0.0
      %149 = vmatpush1.msra.mxu0 0.0
      %150 = vmatprep.subr.mxu0 0.0
      %151 = vmatpush1.msra.mxu0 0.0
      %152 = vmatprep.subr.mxu0 0.0
      %153 = vmatpush1.msra.mxu0 0.0
      %154 = vmatprep.subr.mxu0 0.0
      %155 = vmatpush1.msra.mxu0 0.0
      %156 = vmatprep.subr.mxu0 0.0
      %157 = vmatpush1.msra.mxu0 0.0
      %158 = vmatprep.subr.mxu0 0.0
      %159 = vmatpush1.msra.mxu0 0.0
      %160 = vmatprep.subr.mxu0 0.0
      %161 = vmatpush1.msra.mxu0 0.0
      %162 = vmatprep.subr.mxu0 0.0
      %163 = vmatpush1.msra.mxu0 0.0
      %164 = vmatprep.subr.mxu0 0.0
      %165 = vmatpush1.msra.mxu0 0.0
      %166 = vmatprep.subr.mxu0 0.0
      %167 = vmatpush1.msra.mxu0 0.0
      %168 = vmatprep.subr.mxu0 0.0
      %169 = vmatpush1.msra.mxu0 0.0
      %170 = vmatprep.subr.mxu0 0.0
      %171 = vmatpush1.msra.mxu0 0.0
      %172 = vmatprep.subr.mxu0 0.0
      %173 = vmatpush1.msra.mxu0 0.0
      %174 = vmatprep.subr.mxu0 0.0
      %175 = vmatpush1.msra.mxu0 0.0
      %176 = vmatprep.subr.mxu0 0.0
      %177 = vmatpush1.msra.mxu0 0.0
      %178 = vmatprep.subr.mxu0 0.0
      %179 = vmatpush1.msra.mxu0 0.0
      %180 = vmatprep.mubr.f32.mxu0 0.0
      %181 = vmatmul.mubr.f32.gmra.mrb[0].mxu0 %v111
      %v182 = vpop.f32.mrb[0].mxu0
      %v183 = vadd.f32 %v94, %v182
      %v184 = vpop.f32.mrb[0].mxu0
      %185 = vdwg.mxu0
      %vm186 = vcmask 254976
      %187 = vst.msk [vmem:[#allocation9] sm:$0x3] %vm186, %v183
    $region33: #{tpu_custom_call.1} parent=1 // pred_fallthru
      _
    // Predicated region
    $region34: #{tpu_custom_call.1} parent=1 // pred_check
      _
    $region35: #{tpu_custom_call.1} parent=1 // pred_check_branch
      %189 = sbr.rel (0) target = $region37
    $region36: #{tpu_custom_call.1} parent=1 // pred_region
      %s191 = ssub.s32 32, 32
      %192 = vsyncadd [#allocation5], %s191
      %s194 = sshll.u32 [#allocation9], 4
      %s195 = int_to_ptr.vmem [resolvable:$true] %s194
      %197 = dma.vmem_to_hbm [thread:$0]  %s195, 32, %s3, [#allocation5]
    $region37: #{tpu_custom_call.1} parent=1 // pred_fallthru
      _
    // Predicated region
    $region38: #{tpu_custom_call.1} parent=1 // pred_check
      _
    $region39: #{tpu_custom_call.1} parent=1 // pred_check_branch
      %199 = sbr.rel (0) target = $region41
    $region40: #{tpu_custom_call.1} parent=1 // pred_region
      %200 = dma.done [#allocation5], 32
    $region41: #{tpu_custom_call.1} parent=1 // pred_fallthru
      _
    %201 = vsyncpa [#allocation4], 1
    %202 = vsyncpa [#allocation7], 1
    %203 = vsyncpa [#allocation5], 1

</llo_original>
